<compile_context>
chip_gen: v7x
topology: tpu7x:2x2x1
jax: 0.10.0
libtpu: 0.0.40
codegen_flags: <defaults>
</compile_context>

<pallas_src>
import functools

import jax
import jax.numpy as jnp
from jax import lax
from jax.experimental import pallas as pl
from jax.experimental.pallas import tpu as pltpu


def _round_up(x: int, m: int) -> int:
    return ((x + m - 1) // m) * m


def _sublane_multiple(dtype) -> int:
    # Native sublane packing: f32 -> 8, bf16 -> 16, int8/fp8 -> 32.
    itemsize = jnp.dtype(dtype).itemsize
    if itemsize >= 4:
        return 8
    return 8 * (4 // itemsize)


def _block_budget_bytes() -> int:
    # Per-input-block byte budget (x2 for double buffering).  v7x's ~3.2 TB/s
    # HBM makes the ~0.35 us per-grid-step overhead relatively expensive, so
    # use bigger blocks there; 4 MiB already sits ~90% of roofline on v5e/v6e.
    try:
        kind = jax.devices()[0].device_kind.lower()
    except Exception:
        kind = ""
    if "v7" in kind:
        return 12 * 1024 * 1024
    return 4 * 1024 * 1024


def _pick_cls_batch_tile(B: int, sub: int) -> int:
    if B <= sub:
        return B                      # equals the full dim -> always legal
    half = -(-B // 2)                 # cdiv(B, 2): parallel axis still splits across 2 TCs
    tb = min(_round_up(half, sub), 512)
    return min(tb, _round_up(B, sub))


def _pick_mean_batch_tile(B: int, sub: int) -> int:
    # Small batch tile keeps (tb, ts, H) blocks dominated by the seq axis so
    # the seq tile (and therefore the DMA per grid step) can be large.
    return sub if B >= sub else B


def _pick_seq_tile(S: int, tb: int, H: int, itemsize: int, sub: int,
                   budget: int) -> int:
    # Whole sequence in one block if it fits the per-block budget.
    if tb * S * H * itemsize <= budget:
        return S
    # Largest sublane-aligned tile that fits the budget.
    max_ts = budget // (tb * H * itemsize)
    ts = max((max_ts // sub) * sub, sub)
    ts = min(ts, _round_up(S, sub))
    # Prefer a divisor of S (no tail masking) if one exists that is not much
    # smaller than the budget-sized tile; otherwise accept a masked tail.
    best_div = 0
    for cand in range(ts, 0, -sub):
        if S % cand == 0:
            best_div = cand
            break
    if best_div >= max(ts // 2, sub):
        return best_div
    return ts


# --------------------------- kernels ---------------------------------------


def _cls_pool_flat_kernel(x_ref, o_ref):
    # x_ref: (tb, H) slice of the (B, S*H) view == exactly the CLS token rows.
    o_ref[...] = x_ref[...]


def _cls_pool_window_kernel(x_ref, o_ref):
    # x_ref: (tb, cls_win, H) -- minimal sublane-aligned window holding token 0.
    o_ref[...] = x_ref[:, 0, :]


def _mean_pool_kernel(x_ref, o_ref, acc_ref, *, inv_s, seq_len, ts, need_mask):
    # Grid: (batch blocks, seq blocks).  acc_ref is a resident (tb, H) f32
    # accumulator across the seq ("arbitrary") axis.
    k = pl.program_id(1)

    @pl.when(k == 0)
    def _init():
        acc_ref[...] = jnp.zeros_like(acc_ref)

    x = x_ref[...]
    if need_mask:
        # Non-divisor seq tile: zero out-of-range tokens of the padded tail.
        pos = k * ts + lax.broadcasted_iota(jnp.int32, x.shape, dimension=1)
        x = jnp.where(pos < seq_len, x, jnp.zeros_like(x))

    # dtype-promoting sum: accumulate in f32 without materializing an f32
    # copy of the whole (tb, ts, H) block.
    acc_ref[...] += jnp.sum(x, axis=1, dtype=jnp.float32)

    @pl.when(k == pl.num_programs(1) - 1)
    def _finalize():
        o_ref[...] = (acc_ref[...] * inv_s).astype(o_ref.dtype)


# --------------------------- wrapper ----------------------------------------


def bert_pooling_layer(x, avg: str = "cls", *, batch_tile=None, seq_tile=None):
    """Pallas implementation of BertPoolingLayer.forward.

    x: (B, S, H) array.  Returns (B, H).
    """
    B, S, H = x.shape
    itemsize = jnp.dtype(x.dtype).itemsize
    sub = _sublane_multiple(x.dtype)

    if avg == "cls":
        tb = batch_tile if batch_tile is not None else _pick_cls_batch_tile(B, sub)
        nb = pl.cdiv(B, tb)

        if H % 128 == 0 or S == 1:
            # Read only the CLS token: view x as (B, S*H) (free contiguous
            # reshape) and DMA just the first H lanes of every batch row.
            x_flat = x.reshape(B, S * H)
            return pl.pallas_call(
                _cls_pool_flat_kernel,
                out_shape=jax.ShapeDtypeStruct((B, H), x.dtype),
                grid=(nb,),
                in_specs=[pl.BlockSpec((tb, H), lambda i: (i, 0))],
                out_specs=pl.BlockSpec((tb, H), lambda i: (i, 0)),
                compiler_params=pltpu.CompilerParams(
                    dimension_semantics=("parallel",)),
                cost_estimate=pl.CostEstimate(
                    flops=0, transcendentals=0,
                    bytes_accessed=2 * B * H * itemsize),
            )(x_flat)

        # H not lane-aligned (test-sized hidden dims): fall back to the
        # smallest sublane-aligned token window containing the CLS token.
        cls_win = S if S <= sub else sub
        return pl.pallas_call(
            _cls_pool_window_kernel,
            out_shape=jax.ShapeDtypeStruct((B, H), x.dtype),
            grid=(nb,),
            in_specs=[pl.BlockSpec((tb, cls_win, H), lambda i: (i, 0, 0))],
            out_specs=pl.BlockSpec((tb, H), lambda i: (i, 0)),
            compiler_params=pltpu.CompilerParams(
                dimension_semantics=("parallel",)),
            cost_estimate=pl.CostEstimate(
                flops=0, transcendentals=0,
                bytes_accessed=B * cls_win * H * itemsize + B * H * itemsize),
        )(x)

    # ----- mean-pool branch -----
    tb = batch_tile if batch_tile is not None else _pick_mean_batch_tile(B, sub)
    nb = pl.cdiv(B, tb)

    if seq_tile is not None:
        ts = seq_tile
        assert ts == S or ts % sub == 0, (
            f"seq_tile must equal S or be a multiple of {sub} for {x.dtype}")
    else:
        ts = _pick_seq_tile(S, tb, H, itemsize, sub, _block_budget_bytes())
    nk = pl.cdiv(S, ts)
    need_mask = (S % ts) != 0

    kernel = functools.partial(
        _mean_pool_kernel, inv_s=1.0 / S, seq_len=S, ts=ts, need_mask=need_mask)
    return pl.pallas_call(
        kernel,
        out_shape=jax.ShapeDtypeStruct((B, H), x.dtype),
        grid=(nb, nk),
        in_specs=[pl.BlockSpec((tb, ts, H), lambda i, k: (i, k, 0))],
        # Output block index is independent of k -> stays resident (accumulator).
        out_specs=pl.BlockSpec((tb, H), lambda i, k: (i, 0)),
        scratch_shapes=[pltpu.VMEM((tb, H), jnp.float32)],
        compiler_params=pltpu.CompilerParams(
            dimension_semantics=("parallel", "arbitrary"),
            vmem_limit_bytes=48 * 1024 * 1024),
        cost_estimate=pl.CostEstimate(
            flops=B * S * H,
            transcendentals=0,
            bytes_accessed=B * S * H * itemsize + B * H * itemsize),
    )(x)


if __name__ == "__main__":
    key = jax.random.PRNGKey(0)

    # Small shapes consistent with BERT hidden states: (batch, seq, hidden).
    B, S, H = 2, 8, 32
    x = jax.random.normal(key, (B, S, H), dtype=jnp.float32)

    out_cls = jax.block_until_ready(bert_pooling_layer(x, avg="cls"))
    assert out_cls.shape == (B, H)
    assert jnp.allclose(out_cls, x[:, 0, :], atol=1e-6, rtol=1e-6)

    out_mean = jax.block_until_ready(bert_pooling_layer(x, avg="mean"))
    assert out_mean.shape == (B, H)
    assert jnp.allclose(out_mean, jnp.mean(x, axis=1), atol=1e-5, rtol=1e-5)

    # Larger f32 shape: multiple batch blocks (parallel axis), multi-step seq
    # accumulation, and the lane-aligned (H % 128 == 0) CLS fast path.
    B2, S2, H2 = 16, 256, 128
    x2 = jax.random.normal(jax.random.PRNGKey(0), (B2, S2, H2),
                           dtype=jnp.float32)

    out_cls2 = jax.block_until_ready(bert_pooling_layer(x2, avg="cls"))
    assert jnp.allclose(out_cls2, x2[:, 0, :], atol=1e-6, rtol=1e-6)

    out_mean2 = jax.block_until_ready(
        bert_pooling_layer(x2, avg="mean", seq_tile=64))
    assert jnp.allclose(out_mean2, jnp.mean(x2, axis=1), atol=1e-5, rtol=1e-5)

    # bf16, batch not a multiple of 8, seq tile that does NOT divide S:
    # exercises dtype-aware sublane tiling, partial batch tiles and the
    # masked sequence tail.
    B3, S3, H3 = 12, 200, 128
    x3 = jax.random.normal(jax.random.PRNGKey(1), (B3, S3, H3),
                           dtype=jnp.float32).astype(jnp.bfloat16)

    out_cls3 = jax.block_until_ready(bert_pooling_layer(x3, avg="cls"))
    assert jnp.array_equal(out_cls3, x3[:, 0, :])

    out_mean3 = jax.block_until_ready(
        bert_pooling_layer(x3, avg="mean", seq_tile=48))
    ref3 = jnp.mean(x3.astype(jnp.float32), axis=1)
    assert jnp.allclose(out_mean3.astype(jnp.float32), ref3,
                        atol=2e-2, rtol=2e-2)

    print("KERNEL_OK")
</pallas_src>

<mosaic_0001>
module attributes {stable_mosaic.version = 11 : i64} {
  func.func @_cls_pool_window_kernel(%arg0: i32, %arg1: memref<2x8x32xf32, #tpu.memory_space<vmem>>, %arg2: memref<2x32xf32, #tpu.memory_space<vmem>>) attributes {dimension_semantics = [#tpu.dimension_semantics<parallel>], iteration_bounds = array<i64: 1>, scalar_prefetch = 0 : i64, scratch_operands = 0 : i64, tpu.core_type = #tpu.core_type<tc>, window_params = [{transform_indices = @transform_0, window_bounds = array<i64: 2, 8, 32>}, {transform_indices = @transform_1, window_bounds = array<i64: 2, 32>}]} {
    %c0 = arith.constant 0 : index
    %c0_0 = arith.constant 0 : index
    %c0_1 = arith.constant 0 : index
    %0 = vector.load %arg1[%c0, %c0_0, %c0_1] : memref<2x8x32xf32, #tpu.memory_space<vmem>>, vector<2x1x32xf32>
    %1 = vector.shape_cast %0 : vector<2x1x32xf32> to vector<2x32xf32>
    %c0_2 = arith.constant 0 : index
    %c0_3 = arith.constant 0 : index
    %2 = vector.load %arg2[%c0_2, %c0_3] : memref<2x32xf32, #tpu.memory_space<vmem>>, vector<2x32xf32>
    tpu.vector_store %arg2[%c0_2, %c0_3], %1 {strides = array<i32>} : memref<2x32xf32, #tpu.memory_space<vmem>>, vector<2x32xf32>,
    return
  }
  func.func @transform_0(%arg0: i32) -> (i32, i32, i32) {
    %c0_i32 = arith.constant 0 : i32
    %c0_i32_0 = arith.constant 0 : i32
    %c0_i32_1 = arith.constant 0 : i32
    return %arg0, %c0_i32, %c0_i32_0 : i32, i32, i32
  }
  func.func @transform_1(%arg0: i32) -> (i32, i32) {
    %c0_i32 = arith.constant 0 : i32
    %c0_i32_0 = arith.constant 0 : i32
    return %arg0, %c0_i32 : i32, i32
  }
}

</mosaic_0001>

<llo_original>
// kernel: tpu_custom_call.1
$region0: #{tpu_custom_call.1}
  #allocation0 [shape = 'u32[]', space=smem, size = 0x4, offset = 0x4, fixed_abs, tag = 'smem constant byte address 0x4 - core index']
  #allocation1 [shape = 'u32[144,128]{1,0:T(1,128)}', space=vmem, size = 0x12000, scoped, tag = 'internal scratch']
  %s0 = inlined_call_operand.hbm [shape: f32[2,8,32], index: 0, kind: input, shape index: {}]
  %s1 = inlined_call_operand.hbm [shape: f32[2,32], index: 1, kind: output, shape index: {}]
  %s2 = sld [smem:[#allocation0]]
  $region18: #{tpu_custom_call.1} parent=0
    _
  %s4 = ssub.s32 1, %s2
  %s5 = scalar_select 0, %s4, %s2
  $region1: #{tpu_custom_call.1} parent=0
    #allocation2 [shape = 'u8[8192]{0}', space=vmem, size = 0x2000, scoped, tag = 'input window, operand 0, single buffered']
    #allocation3 [shape = 's32[1]{0}', space=sflag, size = 0x4, scoped, tag = 'scoped memory for tpu_custom_call.1']
    #allocation4 [shape = 's32[1]{0}', space=sflag, size = 0x4, scoped, tag = 'scoped memory for tpu_custom_call.1']
    #allocation5 [shape = 'u8[1024]{0}', space=vmem, size = 0x400, scoped, tag = 'output window, operand 0, single buffered']
    %6 = vsyncpa [#allocation3], 0
    %7 = vsyncpa [#allocation4], 0
    // Predicated region
    $region2: #{tpu_custom_call.1} parent=1 // pred_check
      _
    $region3: #{tpu_custom_call.1} parent=1 // pred_check_branch
      %9 = sbr.rel (0) target = $region5
    $region4: #{tpu_custom_call.1} parent=1 // pred_region
      %s11 = ssub.s32 256, 256
      %12 = vsyncadd [#allocation3], %s11
      %s13 = sshll.u32 [#allocation2], 4
      %s14 = int_to_ptr.vmem [resolvable:$true] %s13
      %19 = dma.hbm_to_vmem [thread:$0]  %s0, 256, %s14, [#allocation3], 128, 128, 8
    $region5: #{tpu_custom_call.1} parent=1 // pred_fallthru
      _
    // Predicated region
    $region6: #{tpu_custom_call.1} parent=1 // pred_check
      _
    $region7: #{tpu_custom_call.1} parent=1 // pred_check_branch
      %21 = sbr.rel (0) target = $region9
    $region8: #{tpu_custom_call.1} parent=1 // pred_region
      %22 = dma.done [#allocation3], 256
    $region9: #{tpu_custom_call.1} parent=1 // pred_fallthru
      _
    %v23 = vld [vmem:[#allocation2] sm:$0x1]
    %v24 = vld [vmem:[#allocation2 + $0x8] sm:$0x1]
    %v27 = vrot.slane %v24, 7
    %vm28 = vcmask 1041409
    %v29 = vsel %vm28, %v27, %v23
    %vm31 = vcmask 254976
    %32 = vst.msk [vmem:[#allocation5] sm:$0x3] %vm31, %v29
    // Predicated region
    $region10: #{tpu_custom_call.1} parent=1 // pred_check
      _
    $region11: #{tpu_custom_call.1} parent=1 // pred_check_branch
      %34 = sbr.rel (0) target = $region13
    $region12: #{tpu_custom_call.1} parent=1 // pred_region
      %s36 = ssub.s32 32, 32
      %37 = vsyncadd [#allocation4], %s36
      %s39 = sshll.u32 [#allocation5], 4
      %s40 = int_to_ptr.vmem [resolvable:$true] %s39
      %42 = dma.vmem_to_hbm [thread:$0]  %s40, 32, %s1, [#allocation4]
    $region13: #{tpu_custom_call.1} parent=1 // pred_fallthru
      _
    // Predicated region
    $region14: #{tpu_custom_call.1} parent=1 // pred_check
      _
    $region15: #{tpu_custom_call.1} parent=1 // pred_check_branch
      %44 = sbr.rel (0) target = $region17
    $region16: #{tpu_custom_call.1} parent=1 // pred_region
      %45 = dma.done [#allocation4], 32
    $region17: #{tpu_custom_call.1} parent=1 // pred_fallthru
      _
    %46 = vsyncpa [#allocation3], 1
    %47 = vsyncpa [#allocation4], 1

</llo_original>
